<compile_context>
chip_gen: v5e
topology: v5e:2x2
jax: 0.10.0
libtpu: 0.0.40
codegen_flags: <defaults>
</compile_context>

<pallas_src>
import jax
import jax.numpy as jnp
from jax.experimental import pallas as pl
from jax.experimental.pallas import tpu as pltpu


def _nll_partial_sum_kernel(pred_ref, tgt_ref, out_ref):
    pred = pred_ref[...]                                           # (TILE_N, C), native dtype
    tgt = tgt_ref[...]                                             # (TILE_N, 1), int32
    # (1, C) iota row; the compare broadcasts it over rows (no full int32 tile).
    col = jax.lax.broadcasted_iota(jnp.int32, (1, pred.shape[1]), 1)
    # One-hot gather via SELECT: NaN/garbage-safe for the ragged last block
    # (padded target rows are -1 and match no column -> contribute exactly 0).
    picked = jnp.where(col == tgt, pred, jnp.zeros_like(pred))     # (TILE_N, C)
    # Cast to f32 BEFORE reducing, then reduce axis 0 first (VPU sublane adds),
    # leaving a single cross-lane reduce at the end.
    picked_f32 = picked.astype(jnp.float32)
    col_sums = jnp.sum(picked_f32, axis=0, keepdims=True)          # (1, C)
    out_ref[0, 0] = jnp.sum(col_sums)


def _round_up(x, m):
    return -(-x // m) * m


def _pick_tile_n(n, c, itemsize):
    """Tile over N: ~6 MiB of (pred + target) VMEM per pipeline buffer,
    rounded to the dtype's sublane packing, capped to keep >= ~4 grid steps."""
    sub = {4: 8, 2: 16, 1: 32}.get(itemsize, 8)
    pred_row = _round_up(max(c, 1), 128) * itemsize   # VMEM bytes/row (lane-padded)
    tgt_row = 128 * 4                                 # (tile_n,1) int32 pads to 128 lanes
    budget = 6 * 1024 * 1024                          # per buffer; x2 for double-buffering
    tile = max(sub, budget // (pred_row + tgt_row) // sub * sub)
    # Keep several grid steps when N allows it (megacore sharding + pipelining).
    cap = max(sub, _round_up(pl.cdiv(n, 4), sub))
    tile = min(tile, cap, _round_up(n, sub))
    return tile


def nll_loss(pred, target):
    """nn.NLLLoss(weight=None, reduction='mean') forward.

    pred: (N, C) float log-probabilities (f32 or bf16, consumed in native dtype).
    target: (N,) integer class indices.
    """
    n, c = pred.shape
    itemsize = jnp.dtype(pred.dtype).itemsize
    tile_n = _pick_tile_n(n, c, itemsize)
    num_blocks = pl.cdiv(n, tile_n)
    n_pad = num_blocks * tile_n

    tgt = target.astype(jnp.int32).reshape(n, 1)
    if n_pad != n:
        # Pad ONLY the tiny target; -1 matches no class column, so garbage rows
        # in the ragged last pred block are neutralized by the select.
        tgt = jnp.pad(tgt, ((0, n_pad - n), (0, 0)), constant_values=-1)
        if num_blocks == 1:
            # Single block larger than the array: pad the < sublane-group of
            # leftover pred rows so the block never exceeds the array extent.
            pred = jnp.pad(pred, ((0, n_pad - n), (0, 0)))

    cost = pl.CostEstimate(
        flops=3 * n * c,   # compare + select + add per element (rough)
        transcendentals=0,
        bytes_accessed=n * c * itemsize + n_pad * 4 + num_blocks * 4,
    )

    partials = pl.pallas_call(
        _nll_partial_sum_kernel,
        out_shape=jax.ShapeDtypeStruct((num_blocks, 1), jnp.float32),
        grid=(num_blocks,),
        in_specs=[
            pl.BlockSpec((tile_n, c), lambda i: (i, 0)),
            pl.BlockSpec((tile_n, 1), lambda i: (i, 0)),
        ],
        out_specs=pl.BlockSpec((1, 1), lambda i: (i, 0), memory_space=pltpu.SMEM),
        compiler_params=pltpu.CompilerParams(
            dimension_semantics=("parallel",),
            # Double-buffered (pred + target) tiles stay ~<= 26 MiB; 40 MiB is
            # safe on v5e/v6e (128 MiB physical) and v7x (64 MiB physical).
            vmem_limit_bytes=40 * 1024 * 1024,
        ),
        cost_estimate=cost,
    )(pred, tgt)

    # reduction='mean' with weight=None -> divide by the true (unpadded) N.
    return -jnp.sum(partials) / jnp.float32(n)


if __name__ == "__main__":
    key = jax.random.PRNGKey(0)

    # Case 1: small f32, N a multiple of the sublane width.
    N, C = 8, 32
    k1, k2, k3, k4 = jax.random.split(key, 4)
    logits = jax.random.normal(k1, (N, C), dtype=jnp.float32)
    pred = jax.nn.log_softmax(logits, axis=-1)            # NLLLoss expects log-probs
    target = jax.random.randint(k2, (N,), 0, C, dtype=jnp.int32)

    loss = nll_loss(pred, target)
    jax.block_until_ready(loss)
    ref = -jnp.mean(pred[jnp.arange(N), target])
    assert jnp.allclose(loss, ref, atol=1e-5, rtol=1e-5), (loss, ref)

    # Case 2: bf16 input, N not a tile multiple (exercises target-only padding
    # + native-dtype path + single partial block).
    N2, C2 = 13, 32
    logits2 = jax.random.normal(k3, (N2, C2), dtype=jnp.float32)
    pred2 = jax.nn.log_softmax(logits2, axis=-1).astype(jnp.bfloat16)
    target2 = jax.random.randint(k4, (N2,), 0, C2, dtype=jnp.int32)

    loss2 = nll_loss(pred2, target2)
    jax.block_until_ready(loss2)
    ref2 = -jnp.mean(pred2[jnp.arange(N2), target2].astype(jnp.float32))
    assert jnp.allclose(loss2, ref2, atol=1e-2, rtol=1e-2), (loss2, ref2)

    print("KERNEL_OK")
</pallas_src>

<mosaic_0001>
module attributes {stable_mosaic.version = 11 : i64} {
  func.func @_nll_partial_sum_kernel(%arg0: i32, %arg1: memref<8x32xf32, #tpu.memory_space<vmem>>, %arg2: memref<8x1xi32, #tpu.memory_space<vmem>>, %arg3: memref<1x1xf32, #tpu.memory_space<smem>>) attributes {dimension_semantics = [#tpu.dimension_semantics<parallel>], iteration_bounds = array<i64: 1>, scalar_prefetch = 0 : i64, scratch_operands = 0 : i64, tpu.core_type = #tpu.core_type<tc>, window_params = [{transform_indices = @transform_0, window_bounds = array<i64: 8, 32>}, {transform_indices = @transform_1, window_bounds = array<i64: 8, 1>}, {transform_indices = @transform_2, window_bounds = array<i64: 1, 1>}]} {
    %c0 = arith.constant 0 : index
    %c0_0 = arith.constant 0 : index
    %0 = vector.load %arg1[%c0, %c0_0] : memref<8x32xf32, #tpu.memory_space<vmem>>, vector<8x32xf32>
    %c0_1 = arith.constant 0 : index
    %c0_2 = arith.constant 0 : index
    %1 = vector.load %arg2[%c0_1, %c0_2] : memref<8x1xi32, #tpu.memory_space<vmem>>, vector<8x1xi32>
    %2 = tpu.iota {dimensions = array<i32: 1>} : vector<1x32xi32>
    %3 = vector.broadcast %2 : vector<1x32xi32> to vector<8x32xi32>
    %4 = vector.broadcast %1 : vector<8x1xi32> to vector<8x32xi32>
    %5 = arith.cmpi eq, %3, %4 : vector<8x32xi32>
    %cst = arith.constant 0.000000e+00 : f32
    %6 = vector.broadcast %cst : f32 to vector<8x32xf32>
    %7 = arith.select %5, %0, %6 : vector<8x32xi1>, vector<8x32xf32>
    %cst_3 = arith.constant dense<0.000000e+00> : vector<32xf32>
    %8 = vector.multi_reduction <add>, %7, %cst_3 [0] : vector<8x32xf32> to vector<32xf32>
    %9 = vector.shape_cast %8 : vector<32xf32> to vector<1x32xf32>
    %10 = vector.shape_cast %9 : vector<1x32xf32> to vector<1x1x32xf32>
    %cst_4 = arith.constant dense<0.000000e+00> : vector<1xf32>
    %11 = vector.multi_reduction <add>, %10, %cst_4 [1, 2] : vector<1x1x32xf32> to vector<1xf32>
    %12 = vector.shape_cast %11 : vector<1xf32> to vector<1x1x1xf32>
    %13 = vector.extract %12[0, 0, 0] : f32 from vector<1x1x1xf32>
    %c0_5 = arith.constant 0 : index
    %c0_6 = arith.constant 0 : index
    %14 = memref.load %arg3[%c0_5, %c0_6] : memref<1x1xf32, #tpu.memory_space<smem>>
    memref.store %13, %arg3[%c0_5, %c0_6] : memref<1x1xf32, #tpu.memory_space<smem>>
    return
  }
  func.func @transform_0(%arg0: i32) -> (i32, i32) {
    %c0_i32 = arith.constant 0 : i32
    %c0_i32_0 = arith.constant 0 : i32
    return %arg0, %c0_i32 : i32, i32
  }
  func.func @transform_1(%arg0: i32) -> (i32, i32) {
    %c0_i32 = arith.constant 0 : i32
    %c0_i32_0 = arith.constant 0 : i32
    return %arg0, %c0_i32 : i32, i32
  }
  func.func @transform_2(%arg0: i32) -> (i32, i32) {
    %c0_i32 = arith.constant 0 : i32
    %c0_i32_0 = arith.constant 0 : i32
    return %arg0, %c0_i32 : i32, i32
  }
}

</mosaic_0001>

<llo_original>
// kernel: tpu_custom_call.1
$region0: #{tpu_custom_call.1}
  #allocation0 [shape = 'u32[]', space=smem, size = 0x4, offset = 0x4, fixed_abs, tag = 'smem constant byte address 0x4 - core index']
  #allocation1 [shape = 'u32[72,128]{1,0:T(1,128)}', space=vmem, size = 0x9000, scoped, tag = 'internal scratch']
  %s0 = inlined_call_operand.vmem [shape: f32[8,32], index: 0, kind: input, shape index: {}]
  %s1 = inlined_call_operand.vmem [shape: s32[8,1], index: 1, kind: input, shape index: {}]
  %s2 = inlined_call_operand.hbm [shape: f32[1,1], index: 2, kind: output, shape index: {}]
  %s3 = sld [smem:[#allocation0]]
  $region18: #{tpu_custom_call.1} parent=0
    _
  %s5 = ssub.s32 1, %s3
  %s6 = scalar_select 0, %s5, %s3
  $region1: #{tpu_custom_call.1} parent=0
    #allocation2 [shape = 'u8[512]{0}', space=smem, size = 0x200, scoped, tag = 'output window, operand 0, single buffered']
    #allocation3 [shape = 's32[1]{0}', space=sflag, size = 0x4, scoped, tag = 'scoped memory for tpu_custom_call.1']
    %7 = vsyncpa [#allocation3], 0
    // Predicated region
    $region2: #{tpu_custom_call.1} parent=1 // pred_check
      _
    $region3: #{tpu_custom_call.1} parent=1 // pred_check_branch
      %9 = sbr.rel (0) target = $region5
    $region4: #{tpu_custom_call.1} parent=1 // pred_region
      _
    $region5: #{tpu_custom_call.1} parent=1 // pred_fallthru
      _
    // Predicated region
    $region6: #{tpu_custom_call.1} parent=1 // pred_check
      _
    $region7: #{tpu_custom_call.1} parent=1 // pred_check_branch
      %11 = sbr.rel (0) target = $region9
    $region8: #{tpu_custom_call.1} parent=1 // pred_region
      _
    $region9: #{tpu_custom_call.1} parent=1 // pred_fallthru
      _
    %v12 = vld [vmem:[%s0] sm:$0xff]
    %v13 = vld [vmem:[%s1] sm:$0xff]
    %v14 = vlaneseq
    %v15 = vand.u32 %v14, 127
    %16 = vset.pattern.permute.xlu0 0
    %17 = vperm.xlu0 %16, %v13
    %v18 = vpop.permute.xlu0 %17
    %vm19 = vcmp.eq.s32.totalorder %v15, %v18
    %v20 = vsel %vm19, %v12, 0.0
    %vm21 = vcmask 261120
    %v22 = vsel %vm21, %v20, 0.0
    %v23 = vrot.slane %v22, 4
    %v24 = vadd.f32 %v22, %v23
    %v25 = vrot.slane %v24, 2
    %v26 = vadd.f32 %v24, %v25
    %v27 = vrot.slane %v26, 1
    %v28 = vadd.f32 %v26, %v27
    %vm29 = vcmask 253952
    %v30 = vsel %vm29, %v28, 0.0
    %31 = vadd.xlane.f32.xlu0 %v30
    %v32 = vpop.xlane.xlu0 %31
    %v33 = vrot.slane %v32, 4
    %v34 = vadd.f32 %v32, %v33
    %v35 = vrot.slane %v34, 2
    %v36 = vadd.f32 %v34, %v35
    %v37 = vrot.slane %v36, 1
    %v38 = vadd.f32 %v36, %v37
    %s39 = vtos %v38
    %s40 = scalar_lea.smem [#allocation2], 0
    %41 = sst [smem:[%s40]] %s39
    // Predicated region
    $region10: #{tpu_custom_call.1} parent=1 // pred_check
      _
    $region11: #{tpu_custom_call.1} parent=1 // pred_check_branch
      %43 = sbr.rel (0) target = $region13
    $region12: #{tpu_custom_call.1} parent=1 // pred_region
      %45 = vsyncadd [#allocation3], 0
      %s47 = sshll.u32 %s2, 4
      %s48 = int_to_ptr.hbm [resolvable:$true] %s47
      %50 = dma.smem_to_hbm [#allocation2], 16, %s48, [#allocation3]
    $region13: #{tpu_custom_call.1} parent=1 // pred_fallthru
      _
    // Predicated region
    $region14: #{tpu_custom_call.1} parent=1 // pred_check
      _
    $region15: #{tpu_custom_call.1} parent=1 // pred_check_branch
      %52 = sbr.rel (0) target = $region17
    $region16: #{tpu_custom_call.1} parent=1 // pred_region
      %54 = dma.done [#allocation3], 16
    $region17: #{tpu_custom_call.1} parent=1 // pred_fallthru
      _
    %55 = sfence
    %56 = vsyncpa [#allocation3], 1

</llo_original>
